<compile_context>
chip_gen: v5e
topology: v5e:2x2
jax: 0.10.0
libtpu: 0.0.40
codegen_flags: <defaults>
</compile_context>

<pallas_src>
import math
import functools

import jax
import jax.numpy as jnp
from jax import lax
from jax.experimental import pallas as pl
from jax.experimental.pallas import tpu as pltpu

# ---------------- hyper-parameters (mirror of argparse `opt`) ----------------
BERT_DIM = 32
EC_DIM = 16
E_NUM_CLASS = 7
C_NUM_CLASS = 2
PAIR_NUM_CLASS = 2
PAIR_BOW_DIM = 32
LABEL_SMOOTHING = 0.1
KL_ANN_ITERATIONS = 100
EC_KL_LAMBDA = 0.03
MMD_LOSS_WEIGHT = 1.0
EMO_MUL_LOSS_WEIGHT = 1.0
CAU_MUL_LOSS_WEIGHT = 1.0
PAIR_MUL_LOSS_WEIGHT = 1.0
MMD_ALPHA = 0.1          # alphas=[0.1] passed to MMDStatistic
PDIST_EPS = 1e-5         # torch_two_sample.util.pdist eps
BCE_LOG_CLAMP = -100.0   # PyTorch BCELoss clamps log terms at -100

BATCH = 8                # fills the 8 sublanes of a vreg
SEQ = 8
VOCAB = 64

# ---- bf16 weight slab column layout (shape (VOCAB, W_TOTAL)) ---------------
# Every mm() slice stays inside a single 128-lane vreg tile (heads start at
# exactly lane 128).
EMB_LO, EMB_HI = 0, BERT_DIM                              # token embedding (64x32)
POOL_LO, POOL_HI = EMB_HI, EMB_HI + BERT_DIM              # 32:64   pooler dense
LAT_LO, LAT_HI = POOL_HI, POOL_HI + 4 * EC_DIM            # 64:128  [emu|cmu|elv|clv]
HEAD_LO = LAT_HI                                          # 128
HEAD_TOTAL = E_NUM_CLASS + C_NUM_CLASS + PAIR_NUM_CLASS + PAIR_BOW_DIM   # 43
HEAD_HI = HEAD_LO + HEAD_TOTAL                            # 171
W_TOTAL = HEAD_HI

# ---- column layout within the fused (B, 43) head-output / label tiles ------
C_E0, C_E1 = 0, E_NUM_CLASS                               # emotion logits
C_C0, C_C1 = C_E1, C_E1 + C_NUM_CLASS                     # cause logits
C_P0, C_P1 = C_C1, C_C1 + PAIR_NUM_CLASS                  # pair logits
C_D0, C_D1 = C_P1, C_P1 + PAIR_BOW_DIM                    # decoder logits

# ---- f32 data slab lane layout (ONE input DMA) ------------------------------
# Bias columns 0:171 mirror the weight-slab layout so mm() adds d[:, lo:hi]
# directly; remaining fields are placed so no slice crosses a 128-lane tile
# boundary (ids/masks/eps live in lanes 128..255, labels in lanes 256..298).
BIAS_LO, BIAS_HI = 0, W_TOTAL                             # 0:171
IDS_LO, IDS_HI = 176, 176 + SEQ                           # 176:184
MSK_LO, MSK_HI = IDS_HI, IDS_HI + SEQ                     # 184:192
EPS_LO, EPS_HI = MSK_HI, MSK_HI + 2 * EC_DIM              # 192:224
LBL_LO, LBL_HI = 256, 256 + HEAD_TOTAL                    # 256:299
DATA_W = LBL_HI


def _drl_loss_kernel(w_ref, d_ref, out_ref, *, kl_weight, batch, seq):
    f32 = jnp.float32
    w = w_ref[...]                       # (64, 171) bf16 weight slab
    d = d_ref[...]                       # (B, 299)  f32  data slab

    w_lin = w[0:BERT_DIM, :]             # linear layers live in rows 0:32

    def mm(x, lo, hi):
        # bf16 MXU matmul, f32 accumulation; bias comes from the data slab
        # (same column layout as the weight slab). Elementwise math stays f32.
        return (jnp.dot(x.astype(jnp.bfloat16), w_lin[:, lo:hi],
                        preferred_element_type=f32) + d[:, lo:hi])

    # ----- synthetic encoder stand-in: masked-mean embedding via one MXU push
    ids = d[:, IDS_LO:IDS_HI]                            # (B, S) f32 token ids
    msk = d[:, MSK_LO:MSK_HI]                            # (B, S) f32 attention mask
    vocab_iota = lax.broadcasted_iota(jnp.int32, (1, VOCAB), 1).astype(f32)
    counts = jnp.zeros((batch, VOCAB), f32)
    for s in range(seq):                                 # 8 cheap VPU iterations
        counts = counts + msk[:, s:s + 1] * (
            ids[:, s:s + 1] == vocab_iota).astype(f32)
    mask_sum = jnp.sum(msk, axis=1, keepdims=True)       # (B, 1)
    emb_sum = jnp.dot(counts.astype(jnp.bfloat16), w[:, EMB_LO:EMB_HI],
                      preferred_element_type=f32)        # (B, 32)
    pooled = emb_sum / jnp.maximum(mask_sum, 1.0)

    # ----- pooler: sentence_emb = tanh(pooled @ W_pool + b_pool) -----
    x = jnp.tanh(mm(pooled, POOL_LO, POOL_HI))           # (B, 32)

    # ----- fused latent heads: one matmul for emu|cmu|elv|clv -----
    lat = mm(x, LAT_LO, LAT_HI)                          # (B, 64)
    mu_cat = lat[:, 0:2 * EC_DIM]                        # [emu | cmu]
    lv_cat = lat[:, 2 * EC_DIM:4 * EC_DIM]               # [elv | clv]
    exp_lv = jnp.exp(lv_cat)                             # reused by sampling + KL
    eps_cat = d[:, EPS_LO:EPS_HI]                        # same eps for every row
    # sample_prior: mu + eps * exp(log_var)  (matches the PyTorch source)
    se_sc = mu_cat + eps_cat * exp_lv                    # (B, 32) == cat(se, sc)

    # ----- fused classifier/decoder heads: one block-diagonal matmul -----
    heads = mm(se_sc, HEAD_LO, HEAD_HI)                  # (B, 43)
    lbl = d[:, LBL_LO:LBL_HI]                            # (B, 43)

    elog = heads[:, C_E0:C_E1]
    cp_log = heads[:, C_C0:C_P1]                         # cause+pair logits (B, 4)
    dlog = heads[:, C_D0:C_D1]
    emo_onehot = lbl[:, C_E0:C_E1]
    cp_lab = lbl[:, C_C0:C_P1]
    bow = lbl[:, C_D0:C_D1]

    # ----- emotion CrossEntropyLoss -----
    emax = jnp.max(elog, axis=1, keepdims=True)
    lse = emax + jnp.log(jnp.sum(jnp.exp(elog - emax), axis=1, keepdims=True))
    picked = jnp.sum(emo_onehot * elog, axis=1, keepdims=True)
    emo_mul_loss = jnp.sum(lse - picked) * (1.0 / batch)

    # ----- cause BCE + pair BCEWithLogits on ONE (B, 4) tile -----
    # softplus evaluated once for both losses; per-column coefficients select
    # cause vs pair behaviour; single cross-lane reduction.  The PyTorch
    # isinf() guard (triggered exactly when sum(pair_labels)==0) becomes a
    # gate on the pair columns.
    lab_sum = jnp.sum(cp_lab[:, C_NUM_CLASS:])           # sum(pair_labels)
    pw = (float(batch) - lab_sum) / jnp.maximum(lab_sum, 1.0)   # safe pos_weight
    gate = jnp.where(lab_sum > 0.0, 1.0, 0.0)
    log_sig = -jax.nn.softplus(-cp_log)
    log_1msig = -jax.nn.softplus(cp_log)
    # label-smoothing constant is 0.1/2 for both cause and pair classes
    t_cp = cp_lab * (1.0 - LABEL_SMOOTHING) + LABEL_SMOOTHING / 2.0
    is_pair = lax.broadcasted_iota(jnp.int32, (1, C_P1 - C_C0), 1) >= C_NUM_CLASS
    pos_coef = jnp.where(is_pair, gate * pw, 1.0)
    log_pos = jnp.where(is_pair, log_sig, jnp.maximum(log_sig, BCE_LOG_CLAMP))
    log_neg = jnp.where(is_pair, log_1msig, jnp.maximum(log_1msig, BCE_LOG_CLAMP))
    scale = jnp.where(
        is_pair,
        PAIR_MUL_LOSS_WEIGHT * gate / (batch * PAIR_NUM_CLASS),
        CAU_MUL_LOSS_WEIGHT / (batch * C_NUM_CLASS))
    cp_loss = jnp.sum(-scale * (pos_coef * t_cp * log_pos
                                + (1.0 - t_cp) * log_neg))

    # ----- KL losses: emotion + cause share the annealed weight -> one sum ---
    kl_sum = jnp.sum(1.0 + lv_cat - exp_lv - mu_cat * mu_cat)
    kl_loss = kl_weight * (-0.5 / batch) * kl_sum

    # ----- reconstruction: Softmax + BCELoss via log-softmax; log(1-p) without
    #       a divide (log(dsum - dexp) - log(dsum)) -----
    dmax = jnp.max(dlog, axis=1, keepdims=True)
    dsh = dlog - dmax
    dexp = jnp.exp(dsh)
    dsum = jnp.sum(dexp, axis=1, keepdims=True)
    log_dsum = jnp.log(dsum)
    log_p = dsh - log_dsum
    log_1mp = jnp.log(jnp.maximum(dsum - dexp, 1e-30)) - log_dsum
    t_b = bow * (1.0 - LABEL_SMOOTHING) + LABEL_SMOOTHING / PAIR_BOW_DIM
    reconstruction_loss = jnp.sum(
        -(t_b * jnp.maximum(log_p, BCE_LOG_CLAMP)
          + (1.0 - t_b) * jnp.maximum(log_1mp, BCE_LOG_CLAMP))
    ) * (1.0 / (batch * PAIR_BOW_DIM))

    # ----- MMD (torch_two_sample.MMDStatistic, alphas=[0.1]), negated -----
    se = se_sc[:, 0:EC_DIM]
    sc = se_sc[:, EC_DIM:2 * EC_DIM]
    z = jnp.concatenate([se, sc], axis=0)                # (2B, EC_DIM)
    gram = lax.dot_general(z, z, (((1,), (1,)), ((), ())),
                           preferred_element_type=f32)   # (2B, 2B), one MXU push
    zz = z * z
    nz_col = jnp.sum(zz, axis=1, keepdims=True)          # (2B, 1)
    nz_row = jnp.sum(zz, axis=1)[None, :]                # (1, 2B)
    d2 = nz_col + nz_row - 2.0 * gram
    k = jnp.exp(-MMD_ALPHA * (PDIST_EPS + jnp.abs(d2)))
    sum_all = jnp.sum(k)
    sum_ee = jnp.sum(k[0:batch, 0:batch])
    sum_cc = jnp.sum(k[batch:2 * batch, batch:2 * batch])
    sum_ec = 0.5 * (sum_all - sum_ee - sum_cc)           # k is symmetric
    # diag(d2) == 0, so trace(k_11) = trace(k_22) = B*exp(-alpha*eps): constant.
    tr = float(batch) * math.exp(-MMD_ALPHA * PDIST_EPS)
    a00 = 1.0 / (batch * (batch - 1))
    a01 = -1.0 / (batch * batch)
    mmd = 2.0 * a01 * sum_ec + a00 * (sum_ee - tr) + a00 * (sum_cc - tr)
    mmd_loss = -mmd

    total = (MMD_LOSS_WEIGHT * mmd_loss
             + EMO_MUL_LOSS_WEIGHT * emo_mul_loss
             + cp_loss + kl_loss + reconstruction_loss)
    out_ref[0, 0] = total                                # scalar store to SMEM


def init_params(key):
    def linear_init(k, fan_in, fan_out):
        k1, k2 = jax.random.split(k)
        bound = 1.0 / math.sqrt(fan_in)
        w = jax.random.uniform(k1, (fan_in, fan_out), jnp.float32, -bound, bound)
        b = jax.random.uniform(k2, (1, fan_out), jnp.float32, -bound, bound)
        return w, b

    keys = jax.random.split(key, 11)
    params = {
        "emotion_mu": linear_init(keys[0], BERT_DIM, EC_DIM),
        "emotion_log_var": linear_init(keys[1], BERT_DIM, EC_DIM),
        "cause_mu": linear_init(keys[2], BERT_DIM, EC_DIM),
        "cause_log_var": linear_init(keys[3], BERT_DIM, EC_DIM),
        "emotion_classifier": linear_init(keys[4], EC_DIM, E_NUM_CLASS),
        "cause_classifier": linear_init(keys[5], EC_DIM, C_NUM_CLASS),
        "pair_classifier": linear_init(keys[6], 2 * EC_DIM, PAIR_NUM_CLASS),
        "decoder": linear_init(keys[7], 2 * EC_DIM, PAIR_BOW_DIM),
        # TODO(synk): pretrained RoBERTa/BERT encoder replaced with a deterministic
        # synthetic embedding table + masked mean + tanh pooler (no checkpoint here).
        "tok_emb": jax.random.normal(keys[8], (VOCAB, BERT_DIM), jnp.float32) * 0.1,
        "pooler": linear_init(keys[9], BERT_DIM, BERT_DIM),
    }
    return params, keys[10]


def pack_params(params):
    """Pack the embedding table + all Linear weights into one bf16 slab and all
    biases into one f32 row laid out with the same column offsets."""
    w_pool, b_pool = params["pooler"]
    w_emu, b_emu = params["emotion_mu"]
    w_elv, b_elv = params["emotion_log_var"]
    w_cmu, b_cmu = params["cause_mu"]
    w_clv, b_clv = params["cause_log_var"]
    w_ecls, b_ecls = params["emotion_classifier"]
    w_ccls, b_ccls = params["cause_classifier"]
    w_pcls, b_pcls = params["pair_classifier"]
    w_dec, b_dec = params["decoder"]

    # latent slab: columns [emu | cmu | elv | clv]  -> mu_cat / lv_cat layout
    w_lat = jnp.concatenate([w_emu, w_cmu, w_elv, w_clv], axis=1)        # (32, 64)
    b_lat = jnp.concatenate([b_emu, b_cmu, b_elv, b_clv], axis=1)        # (1, 64)

    # fused head slab (rows indexed by cat(se, sc)): block-diagonal for the
    # single-latent classifiers, dense for pair classifier and decoder.
    w_head = jnp.concatenate([
        jnp.concatenate([w_ecls, jnp.zeros((EC_DIM, E_NUM_CLASS), jnp.float32)], 0),
        jnp.concatenate([jnp.zeros((EC_DIM, C_NUM_CLASS), jnp.float32), w_ccls], 0),
        w_pcls,
        w_dec,
    ], axis=1)                                                           # (32, 43)
    b_head = jnp.concatenate([b_ecls, b_ccls, b_pcls, b_dec], axis=1)    # (1, 43)

    w_linear = jnp.concatenate([w_pool, w_lat, w_head], axis=1)          # (32, 139)
    w_linear = jnp.concatenate([w_linear, jnp.zeros_like(w_linear)], 0)  # (64, 139)
    w_all = jnp.concatenate([params["tok_emb"], w_linear], axis=1)       # (64, 171)

    b_all = jnp.concatenate([jnp.zeros((1, BERT_DIM), jnp.float32),
                             b_pool, b_lat, b_head], axis=1)             # (1, 171)
    return w_all.astype(jnp.bfloat16), b_all.astype(jnp.float32)


@functools.partial(jax.jit, static_argnames=("iteration",))
def drl_classifier_forward(w_all, b_all, input_ids, att_masks, token_type_ids,
                           emotion_labels, cause_labels, pair_labels,
                           content_bow, eps_e, eps_c, *, iteration):
    del token_type_ids  # unused by the synthetic encoder stand-in
    batch = input_ids.shape[0]

    # KL annealing weight (iteration is static -> python-scalar weight)
    if iteration < KL_ANN_ITERATIONS:
        kl_weight = (math.tanh((iteration - KL_ANN_ITERATIONS * 1.5)
                               / (KL_ANN_ITERATIONS / 3)) + 1.0) * EC_KL_LAMBDA
    else:
        kl_weight = 1.0

    # ---- assemble the single f32 data slab (one input DMA) ----
    emo_onehot = jax.nn.one_hot(emotion_labels.reshape(-1),
                                E_NUM_CLASS, dtype=jnp.float32)
    labels = jnp.concatenate(
        [emo_onehot, cause_labels, pair_labels, content_bow], axis=1)    # (B, 43)
    eps_b = jnp.broadcast_to(jnp.concatenate([eps_e, eps_c], axis=1),
                             (batch, 2 * EC_DIM))                        # (B, 32)
    bias_b = jnp.broadcast_to(b_all, (batch, W_TOTAL))                   # (B, 171)
    data = jnp.concatenate([
        bias_b,                                                # 0:171
        jnp.zeros((batch, IDS_LO - BIAS_HI), jnp.float32),     # pad to 176
        input_ids.astype(jnp.float32),                         # 176:184
        att_masks.astype(jnp.float32),                         # 184:192
        eps_b,                                                 # 192:224
        jnp.zeros((batch, LBL_LO - EPS_HI), jnp.float32),      # pad to 256
        labels,                                                # 256:299
    ], axis=1)                                                 # (B, 299)

    kernel = functools.partial(_drl_loss_kernel, kl_weight=float(kl_weight),
                               batch=batch, seq=input_ids.shape[1])
    loss = pl.pallas_call(
        kernel,
        out_shape=jax.ShapeDtypeStruct((1, 1), jnp.float32),
        in_specs=[pl.BlockSpec(memory_space=pltpu.MemorySpace.VMEM),
                  pl.BlockSpec(memory_space=pltpu.MemorySpace.VMEM)],
        out_specs=pl.BlockSpec(memory_space=pltpu.MemorySpace.SMEM),
    )(w_all, data)
    return loss[0, 0]


if __name__ == "__main__":
    key = jax.random.PRNGKey(0)
    params, key = init_params(key)
    w_all, b_all = pack_params(params)
    k = jax.random.split(key, 8)

    input_ids = jax.random.randint(k[0], (BATCH, SEQ), 0, VOCAB, dtype=jnp.int32)
    att_masks = jnp.ones((BATCH, SEQ), dtype=jnp.int32)
    token_type_ids = jnp.zeros((BATCH, SEQ), dtype=jnp.int32)
    emotion_labels = jax.random.randint(k[1], (BATCH, 1), 0, E_NUM_CLASS,
                                        dtype=jnp.int32)
    cause_labels = jax.random.bernoulli(k[2], 0.5,
                                        (BATCH, C_NUM_CLASS)).astype(jnp.float32)
    pair_labels = jax.random.bernoulli(k[3], 0.5,
                                       (BATCH, PAIR_NUM_CLASS)).astype(jnp.float32)
    pair_labels = pair_labels.at[0, 0].set(1.0)  # keep pos_weight finite
    content_bow = jax.random.uniform(k[4], (BATCH, PAIR_BOW_DIM),
                                     jnp.float32, 0.0, 1.0)
    # epsilon for sample_prior: torch.randn(mu.size(1)), broadcast over batch
    eps_e = jax.random.normal(k[5], (1, EC_DIM), jnp.float32)
    eps_c = jax.random.normal(k[6], (1, EC_DIM), jnp.float32)

    loss = drl_classifier_forward(w_all, b_all, input_ids, att_masks,
                                  token_type_ids, emotion_labels, cause_labels,
                                  pair_labels, content_bow, eps_e, eps_c,
                                  iteration=10)
    jax.block_until_ready(loss)
    print("KERNEL_OK")
</pallas_src>

<mosaic_0001>
module attributes {stable_mosaic.version = 11 : i64} {
  func.func @_drl_loss_kernel(%arg0: memref<64x171xbf16, #tpu.memory_space<vmem>>, %arg1: memref<8x299xf32, #tpu.memory_space<vmem>>, %arg2: memref<1x1xf32, #tpu.memory_space<smem>>) attributes {dimension_semantics = [], scalar_prefetch = 0 : i64, scratch_operands = 0 : i64, tpu.core_type = #tpu.core_type<tc>} {
    %c0 = arith.constant 0 : index
    %c0_0 = arith.constant 0 : index
    %0 = vector.load %arg0[%c0, %c0_0] : memref<64x171xbf16, #tpu.memory_space<vmem>>, vector<64x171xbf16>
    %c0_1 = arith.constant 0 : index
    %c0_2 = arith.constant 0 : index
    %1 = vector.load %arg1[%c0_1, %c0_2] : memref<8x299xf32, #tpu.memory_space<vmem>>, vector<8x299xf32>
    %2 = vector.extract_strided_slice %0 {offsets = [0, 0], sizes = [32, 171], strides = [1, 1]} : vector<64x171xbf16> to vector<32x171xbf16>
    %3 = vector.extract_strided_slice %1 {offsets = [0, 176], sizes = [8, 8], strides = [1, 1]} : vector<8x299xf32> to vector<8x8xf32>
    %4 = vector.extract_strided_slice %1 {offsets = [0, 184], sizes = [8, 8], strides = [1, 1]} : vector<8x299xf32> to vector<8x8xf32>
    %5 = tpu.iota {dimensions = array<i32: 1>} : vector<1x64xi32>
    %6 = arith.sitofp %5 : vector<1x64xi32> to vector<1x64xf32>
    %cst = arith.constant 0.000000e+00 : f32
    %7 = vector.broadcast %cst : f32 to vector<8x64xf32>
    %8 = vector.extract_strided_slice %4 {offsets = [0, 0], sizes = [8, 1], strides = [1, 1]} : vector<8x8xf32> to vector<8x1xf32>
    %9 = vector.extract_strided_slice %3 {offsets = [0, 0], sizes = [8, 1], strides = [1, 1]} : vector<8x8xf32> to vector<8x1xf32>
    %10 = vector.broadcast %9 : vector<8x1xf32> to vector<8x64xf32>
    %11 = vector.broadcast %6 : vector<1x64xf32> to vector<8x64xf32>
    %12 = arith.cmpf oeq, %10, %11 : vector<8x64xf32>
    %13 = arith.extui %12 : vector<8x64xi1> to vector<8x64xi32>
    %14 = arith.sitofp %13 : vector<8x64xi32> to vector<8x64xf32>
    %15 = vector.broadcast %8 : vector<8x1xf32> to vector<8x64xf32>
    %16 = arith.mulf %15, %14 : vector<8x64xf32>
    %17 = arith.addf %7, %16 : vector<8x64xf32>
    %18 = vector.extract_strided_slice %4 {offsets = [0, 1], sizes = [8, 1], strides = [1, 1]} : vector<8x8xf32> to vector<8x1xf32>
    %19 = vector.extract_strided_slice %3 {offsets = [0, 1], sizes = [8, 1], strides = [1, 1]} : vector<8x8xf32> to vector<8x1xf32>
    %20 = vector.broadcast %19 : vector<8x1xf32> to vector<8x64xf32>
    %21 = vector.broadcast %6 : vector<1x64xf32> to vector<8x64xf32>
    %22 = arith.cmpf oeq, %20, %21 : vector<8x64xf32>
    %23 = arith.extui %22 : vector<8x64xi1> to vector<8x64xi32>
    %24 = arith.sitofp %23 : vector<8x64xi32> to vector<8x64xf32>
    %25 = vector.broadcast %18 : vector<8x1xf32> to vector<8x64xf32>
    %26 = arith.mulf %25, %24 : vector<8x64xf32>
    %27 = arith.addf %17, %26 : vector<8x64xf32>
    %28 = vector.extract_strided_slice %4 {offsets = [0, 2], sizes = [8, 1], strides = [1, 1]} : vector<8x8xf32> to vector<8x1xf32>
    %29 = vector.extract_strided_slice %3 {offsets = [0, 2], sizes = [8, 1], strides = [1, 1]} : vector<8x8xf32> to vector<8x1xf32>
    %30 = vector.broadcast %29 : vector<8x1xf32> to vector<8x64xf32>
    %31 = vector.broadcast %6 : vector<1x64xf32> to vector<8x64xf32>
    %32 = arith.cmpf oeq, %30, %31 : vector<8x64xf32>
    %33 = arith.extui %32 : vector<8x64xi1> to vector<8x64xi32>
    %34 = arith.sitofp %33 : vector<8x64xi32> to vector<8x64xf32>
    %35 = vector.broadcast %28 : vector<8x1xf32> to vector<8x64xf32>
    %36 = arith.mulf %35, %34 : vector<8x64xf32>
    %37 = arith.addf %27, %36 : vector<8x64xf32>
    %38 = vector.extract_strided_slice %4 {offsets = [0, 3], sizes = [8, 1], strides = [1, 1]} : vector<8x8xf32> to vector<8x1xf32>
    %39 = vector.extract_strided_slice %3 {offsets = [0, 3], sizes = [8, 1], strides = [1, 1]} : vector<8x8xf32> to vector<8x1xf32>
    %40 = vector.broadcast %39 : vector<8x1xf32> to vector<8x64xf32>
    %41 = vector.broadcast %6 : vector<1x64xf32> to vector<8x64xf32>
    %42 = arith.cmpf oeq, %40, %41 : vector<8x64xf32>
    %43 = arith.extui %42 : vector<8x64xi1> to vector<8x64xi32>
    %44 = arith.sitofp %43 : vector<8x64xi32> to vector<8x64xf32>
    %45 = vector.broadcast %38 : vector<8x1xf32> to vector<8x64xf32>
    %46 = arith.mulf %45, %44 : vector<8x64xf32>
    %47 = arith.addf %37, %46 : vector<8x64xf32>
    %48 = vector.extract_strided_slice %4 {offsets = [0, 4], sizes = [8, 1], strides = [1, 1]} : vector<8x8xf32> to vector<8x1xf32>
    %49 = vector.extract_strided_slice %3 {offsets = [0, 4], sizes = [8, 1], strides = [1, 1]} : vector<8x8xf32> to vector<8x1xf32>
    %50 = vector.broadcast %49 : vector<8x1xf32> to vector<8x64xf32>
    %51 = vector.broadcast %6 : vector<1x64xf32> to vector<8x64xf32>
    %52 = arith.cmpf oeq, %50, %51 : vector<8x64xf32>
    %53 = arith.extui %52 : vector<8x64xi1> to vector<8x64xi32>
    %54 = arith.sitofp %53 : vector<8x64xi32> to vector<8x64xf32>
    %55 = vector.broadcast %48 : vector<8x1xf32> to vector<8x64xf32>
    %56 = arith.mulf %55, %54 : vector<8x64xf32>
    %57 = arith.addf %47, %56 : vector<8x64xf32>
    %58 = vector.extract_strided_slice %4 {offsets = [0, 5], sizes = [8, 1], strides = [1, 1]} : vector<8x8xf32> to vector<8x1xf32>
    %59 = vector.extract_strided_slice %3 {offsets = [0, 5], sizes = [8, 1], strides = [1, 1]} : vector<8x8xf32> to vector<8x1xf32>
    %60 = vector.broadcast %59 : vector<8x1xf32> to vector<8x64xf32>
    %61 = vector.broadcast %6 : vector<1x64xf32> to vector<8x64xf32>
    %62 = arith.cmpf oeq, %60, %61 : vector<8x64xf32>
    %63 = arith.extui %62 : vector<8x64xi1> to vector<8x64xi32>
    %64 = arith.sitofp %63 : vector<8x64xi32> to vector<8x64xf32>
    %65 = vector.broadcast %58 : vector<8x1xf32> to vector<8x64xf32>
    %66 = arith.mulf %65, %64 : vector<8x64xf32>
    %67 = arith.addf %57, %66 : vector<8x64xf32>
    %68 = vector.extract_strided_slice %4 {offsets = [0, 6], sizes = [8, 1], strides = [1, 1]} : vector<8x8xf32> to vector<8x1xf32>
    %69 = vector.extract_strided_slice %3 {offsets = [0, 6], sizes = [8, 1], strides = [1, 1]} : vector<8x8xf32> to vector<8x1xf32>
    %70 = vector.broadcast %69 : vector<8x1xf32> to vector<8x64xf32>
    %71 = vector.broadcast %6 : vector<1x64xf32> to vector<8x64xf32>
    %72 = arith.cmpf oeq, %70, %71 : vector<8x64xf32>
    %73 = arith.extui %72 : vector<8x64xi1> to vector<8x64xi32>
    %74 = arith.sitofp %73 : vector<8x64xi32> to vector<8x64xf32>
    %75 = vector.broadcast %68 : vector<8x1xf32> to vector<8x64xf32>
    %76 = arith.mulf %75, %74 : vector<8x64xf32>
    %77 = arith.addf %67, %76 : vector<8x64xf32>
    %78 = vector.extract_strided_slice %4 {offsets = [0, 7], sizes = [8, 1], strides = [1, 1]} : vector<8x8xf32> to vector<8x1xf32>
    %79 = vector.extract_strided_slice %3 {offsets = [0, 7], sizes = [8, 1], strides = [1, 1]} : vector<8x8xf32> to vector<8x1xf32>
    %80 = vector.broadcast %79 : vector<8x1xf32> to vector<8x64xf32>
    %81 = vector.broadcast %6 : vector<1x64xf32> to vector<8x64xf32>
    %82 = arith.cmpf oeq, %80, %81 : vector<8x64xf32>
    %83 = arith.extui %82 : vector<8x64xi1> to vector<8x64xi32>
    %84 = arith.sitofp %83 : vector<8x64xi32> to vector<8x64xf32>
    %85 = vector.broadcast %78 : vector<8x1xf32> to vector<8x64xf32>
    %86 = arith.mulf %85, %84 : vector<8x64xf32>
    %87 = arith.addf %77, %86 : vector<8x64xf32>
    %cst_3 = arith.constant dense<0.000000e+00> : vector<8xf32>
    %88 = vector.multi_reduction <add>, %4, %cst_3 [1] : vector<8x8xf32> to vector<8xf32>
    %89 = vector.shape_cast %88 : vector<8xf32> to vector<8x1xf32>
    %90 = arith.truncf %87 : vector<8x64xf32> to vector<8x64xbf16>
    %91 = vector.extract_strided_slice %0 {offsets = [0, 0], sizes = [64, 32], strides = [1, 1]} : vector<64x171xbf16> to vector<64x32xbf16>
    %cst_4 = arith.constant dense<0.000000e+00> : vector<8x32xf32>
    %92 = tpu.matmul %90, %91, %cst_4 {dimension_numbers = #tpu.dot_dimension_numbers<[1], [0], [0], [1], [0, 0, 1, 1], [], []>} : vector<8x64xbf16>, vector<64x32xbf16>, vector<8x32xf32> -> vector<8x32xf32>
    %cst_5 = arith.constant 1.000000e+00 : f32
    %93 = vector.broadcast %cst_5 : f32 to vector<8x1xf32>
    %94 = arith.maximumf %89, %93 : vector<8x1xf32>
    %95 = vector.broadcast %94 : vector<8x1xf32> to vector<8x32xf32>
    %96 = arith.divf %92, %95 : vector<8x32xf32>
    %97 = arith.truncf %96 : vector<8x32xf32> to vector<8x32xbf16>
    %98 = vector.extract_strided_slice %2 {offsets = [0, 32], sizes = [32, 32], strides = [1, 1]} : vector<32x171xbf16> to vector<32x32xbf16>
    %cst_6 = arith.constant dense<0.000000e+00> : vector<8x32xf32>
    %99 = tpu.matmul %97, %98, %cst_6 {dimension_numbers = #tpu.dot_dimension_numbers<[1], [0], [0], [1], [0, 0, 1, 1], [], []>} : vector<8x32xbf16>, vector<32x32xbf16>, vector<8x32xf32> -> vector<8x32xf32>
    %100 = vector.extract_strided_slice %1 {offsets = [0, 32], sizes = [8, 32], strides = [1, 1]} : vector<8x299xf32> to vector<8x32xf32>
    %101 = arith.addf %99, %100 : vector<8x32xf32>
    %102 = math.tanh %101 : vector<8x32xf32>
    %103 = arith.truncf %102 : vector<8x32xf32> to vector<8x32xbf16>
    %104 = vector.extract_strided_slice %2 {offsets = [0, 64], sizes = [32, 64], strides = [1, 1]} : vector<32x171xbf16> to vector<32x64xbf16>
    %cst_7 = arith.constant dense<0.000000e+00> : vector<8x64xf32>
    %105 = tpu.matmul %103, %104, %cst_7 {dimension_numbers = #tpu.dot_dimension_numbers<[1], [0], [0], [1], [0, 0, 1, 1], [], []>} : vector<8x32xbf16>, vector<32x64xbf16>, vector<8x64xf32> -> vector<8x64xf32>
    %106 = vector.extract_strided_slice %1 {offsets = [0, 64], sizes = [8, 64], strides = [1, 1]} : vector<8x299xf32> to vector<8x64xf32>
    %107 = arith.addf %105, %106 : vector<8x64xf32>
    %108 = vector.extract_strided_slice %107 {offsets = [0, 0], sizes = [8, 32], strides = [1, 1]} : vector<8x64xf32> to vector<8x32xf32>
    %109 = vector.extract_strided_slice %107 {offsets = [0, 32], sizes = [8, 32], strides = [1, 1]} : vector<8x64xf32> to vector<8x32xf32>
    %110 = math.exp %109 : vector<8x32xf32>
    %111 = vector.extract_strided_slice %1 {offsets = [0, 192], sizes = [8, 32], strides = [1, 1]} : vector<8x299xf32> to vector<8x32xf32>
    %112 = arith.mulf %111, %110 : vector<8x32xf32>
    %113 = arith.addf %108, %112 : vector<8x32xf32>
    %114 = arith.truncf %113 : vector<8x32xf32> to vector<8x32xbf16>
    %115 = vector.extract_strided_slice %2 {offsets = [0, 128], sizes = [32, 43], strides = [1, 1]} : vector<32x171xbf16> to vector<32x43xbf16>
    %cst_8 = arith.constant dense<0.000000e+00> : vector<8x43xf32>
    %116 = tpu.matmul %114, %115, %cst_8 {dimension_numbers = #tpu.dot_dimension_numbers<[1], [0], [0], [1], [0, 0, 1, 1], [], []>} : vector<8x32xbf16>, vector<32x43xbf16>, vector<8x43xf32> -> vector<8x43xf32>
    %117 = vector.extract_strided_slice %1 {offsets = [0, 128], sizes = [8, 43], strides = [1, 1]} : vector<8x299xf32> to vector<8x43xf32>
    %118 = arith.addf %116, %117 : vector<8x43xf32>
    %119 = vector.extract_strided_slice %1 {offsets = [0, 256], sizes = [8, 43], strides = [1, 1]} : vector<8x299xf32> to vector<8x43xf32>
    %120 = vector.extract_strided_slice %118 {offsets = [0, 0], sizes = [8, 7], strides = [1, 1]} : vector<8x43xf32> to vector<8x7xf32>
    %121 = vector.extract_strided_slice %118 {offsets = [0, 7], sizes = [8, 4], strides = [1, 1]} : vector<8x43xf32> to vector<8x4xf32>
    %122 = vector.extract_strided_slice %118 {offsets = [0, 11], sizes = [8, 32], strides = [1, 1]} : vector<8x43xf32> to vector<8x32xf32>
    %123 = vector.extract_strided_slice %119 {offsets = [0, 0], sizes = [8, 7], strides = [1, 1]} : vector<8x43xf32> to vector<8x7xf32>
    %124 = vector.extract_strided_slice %119 {offsets = [0, 7], sizes = [8, 4], strides = [1, 1]} : vector<8x43xf32> to vector<8x4xf32>
    %125 = vector.extract_strided_slice %119 {offsets = [0, 11], sizes = [8, 32], strides = [1, 1]} : vector<8x43xf32> to vector<8x32xf32>
    %cst_9 = arith.constant dense<0xFF800000> : vector<8xf32>
    %126 = vector.multi_reduction <maximumf>, %120, %cst_9 [1] : vector<8x7xf32> to vector<8xf32>
    %127 = vector.shape_cast %126 : vector<8xf32> to vector<8x1xf32>
    %128 = vector.broadcast %127 : vector<8x1xf32> to vector<8x7xf32>
    %129 = arith.subf %120, %128 : vector<8x7xf32>
    %130 = math.exp %129 : vector<8x7xf32>
    %cst_10 = arith.constant dense<0.000000e+00> : vector<8xf32>
    %131 = vector.multi_reduction <add>, %130, %cst_10 [1] : vector<8x7xf32> to vector<8xf32>
    %132 = vector.shape_cast %131 : vector<8xf32> to vector<8x1xf32>
    %133 = math.log %132 : vector<8x1xf32>
    %134 = arith.addf %127, %133 : vector<8x1xf32>
    %135 = arith.mulf %123, %120 : vector<8x7xf32>
    %cst_11 = arith.constant dense<0.000000e+00> : vector<8xf32>
    %136 = vector.multi_reduction <add>, %135, %cst_11 [1] : vector<8x7xf32> to vector<8xf32>
    %137 = vector.shape_cast %136 : vector<8xf32> to vector<8x1xf32>
    %138 = arith.subf %134, %137 : vector<8x1xf32>
    %139 = vector.shape_cast %138 : vector<8x1xf32> to vector<1x8x1xf32>
    %cst_12 = arith.constant dense<0.000000e+00> : vector<1xf32>
    %140 = vector.multi_reduction <add>, %139, %cst_12 [1, 2] : vector<1x8x1xf32> to vector<1xf32>
    %141 = vector.shape_cast %140 : vector<1xf32> to vector<1x1x1xf32>
    %142 = vector.extract %141[0, 0, 0] : f32 from vector<1x1x1xf32>
    %cst_13 = arith.constant 1.250000e-01 : f32
    %143 = arith.mulf %142, %cst_13 : f32
    %144 = vector.extract_strided_slice %124 {offsets = [0, 2], sizes = [8, 2], strides = [1, 1]} : vector<8x4xf32> to vector<8x2xf32>
    %145 = vector.shape_cast %144 : vector<8x2xf32> to vector<1x8x2xf32>
    %cst_14 = arith.constant dense<0.000000e+00> : vector<1xf32>
    %146 = vector.multi_reduction <add>, %145, %cst_14 [1, 2] : vector<1x8x2xf32> to vector<1xf32>
    %147 = vector.shape_cast %146 : vector<1xf32> to vector<1x1x1xf32>
    %148 = vector.extract %147[0, 0, 0] : f32 from vector<1x1x1xf32>
    %cst_15 = arith.constant 8.000000e+00 : f32
    %149 = arith.subf %cst_15, %148 : f32
    %cst_16 = arith.constant 1.000000e+00 : f32
    %150 = arith.maximumf %148, %cst_16 : f32
    %151 = arith.divf %149, %150 : f32
    %cst_17 = arith.constant 0.000000e+00 : f32
    %152 = arith.cmpf ogt, %148, %cst_17 : f32
    %cst_18 = arith.constant 1.000000e+00 : f32
    %cst_19 = arith.constant 0.000000e+00 : f32
    %153 = arith.select %152, %cst_18, %cst_19 : f32
    %cst_20 = arith.constant 0.000000e+00 : f32
    %154 = vector.broadcast %cst_20 : f32 to vector<8x4xf32>
    %155 = arith.subf %154, %121 : vector<8x4xf32>
    %cst_21 = arith.constant 0.000000e+00 : f32
    %156 = vector.broadcast %cst_21 : f32 to vector<8x4xf32>
    %157 = arith.maximumf %155, %156 : vector<8x4xf32>
    %158 = vector.broadcast %cst_21 : f32 to vector<8x4xf32>
    %159 = arith.subf %155, %158 : vector<8x4xf32>
    %160 = arith.cmpf one, %159, %159 : vector<8x4xf32>
    %161 = vector.broadcast %cst_21 : f32 to vector<8x4xf32>
    %162 = arith.addf %155, %161 : vector<8x4xf32>
    %163 = math.absf %159 : vector<8x4xf32>
    %cst_22 = arith.constant 0.000000e+00 : f32
    %164 = vector.broadcast %cst_22 : f32 to vector<8x4xf32>
    %165 = arith.subf %164, %163 : vector<8x4xf32>
    %166 = math.exp %165 : vector<8x4xf32>
    %167 = math.log1p %166 : vector<8x4xf32>
    %168 = arith.addf %157, %167 : vector<8x4xf32>
    %169 = arith.select %160, %162, %168 : vector<8x4xi1>, vector<8x4xf32>
    %cst_23 = arith.constant 0.000000e+00 : f32
    %170 = vector.broadcast %cst_23 : f32 to vector<8x4xf32>
    %171 = arith.subf %170, %169 : vector<8x4xf32>
    %cst_24 = arith.constant 0.000000e+00 : f32
    %172 = vector.broadcast %cst_24 : f32 to vector<8x4xf32>
    %173 = arith.maximumf %121, %172 : vector<8x4xf32>
    %174 = vector.broadcast %cst_24 : f32 to vector<8x4xf32>
    %175 = arith.subf %121, %174 : vector<8x4xf32>
    %176 = arith.cmpf one, %175, %175 : vector<8x4xf32>
    %177 = vector.broadcast %cst_24 : f32 to vector<8x4xf32>
    %178 = arith.addf %121, %177 : vector<8x4xf32>
    %179 = math.absf %175 : vector<8x4xf32>
    %cst_25 = arith.constant 0.000000e+00 : f32
    %180 = vector.broadcast %cst_25 : f32 to vector<8x4xf32>
    %181 = arith.subf %180, %179 : vector<8x4xf32>
    %182 = math.exp %181 : vector<8x4xf32>
    %183 = math.log1p %182 : vector<8x4xf32>
    %184 = arith.addf %173, %183 : vector<8x4xf32>
    %185 = arith.select %176, %178, %184 : vector<8x4xi1>, vector<8x4xf32>
    %cst_26 = arith.constant 0.000000e+00 : f32
    %186 = vector.broadcast %cst_26 : f32 to vector<8x4xf32>
    %187 = arith.subf %186, %185 : vector<8x4xf32>
    %cst_27 = arith.constant 0.899999976 : f32
    %188 = vector.broadcast %cst_27 : f32 to vector<8x4xf32>
    %189 = arith.mulf %124, %188 : vector<8x4xf32>
    %cst_28 = arith.constant 5.000000e-02 : f32
    %190 = vector.broadcast %cst_28 : f32 to vector<8x4xf32>
    %191 = arith.addf %189, %190 : vector<8x4xf32>
    %192 = tpu.iota {dimensions = array<i32: 1>} : vector<1x4xi32>
    %c2_i32 = arith.constant 2 : i32
    %193 = vector.broadcast %c2_i32 : i32 to vector<1x4xi32>
    %194 = arith.cmpi sge, %192, %193 : vector<1x4xi32>
    %195 = arith.mulf %153, %151 : f32
    %cst_29 = arith.constant 1.000000e+00 : f32
    %196 = vector.broadcast %195 : f32 to vector<1x4xf32>
    %197 = vector.broadcast %cst_29 : f32 to vector<1x4xf32>
    %198 = arith.select %194, %196, %197 : vector<1x4xi1>, vector<1x4xf32>
    %cst_30 = arith.constant -1.000000e+02 : f32
    %199 = vector.broadcast %cst_30 : f32 to vector<8x4xf32>
    %200 = arith.maximumf %171, %199 : vector<8x4xf32>
    %201 = vector.shape_cast %194 : vector<1x4xi1> to vector<1x4xi1>
    %202 = vector.broadcast %201 : vector<1x4xi1> to vector<8x4xi1>
    %203 = arith.select %202, %171, %200 : vector<8x4xi1>, vector<8x4xf32>
    %cst_31 = arith.constant -1.000000e+02 : f32
    %204 = vector.broadcast %cst_31 : f32 to vector<8x4xf32>
    %205 = arith.maximumf %187, %204 : vector<8x4xf32>
    %206 = vector.shape_cast %194 : vector<1x4xi1> to vector<1x4xi1>
    %207 = vector.broadcast %206 : vector<1x4xi1> to vector<8x4xi1>
    %208 = arith.select %207, %187, %205 : vector<8x4xi1>, vector<8x4xf32>
    %cst_32 = arith.constant 1.000000e+00 : f32
    %209 = arith.mulf %cst_32, %153 : f32
    %cst_33 = arith.constant 1.600000e+01 : f32
    %210 = arith.divf %209, %cst_33 : f32
    %cst_34 = arith.constant 6.250000e-02 : f32
    %211 = vector.broadcast %210 : f32 to vector<1x4xf32>
    %212 = vector.broadcast %cst_34 : f32 to vector<1x4xf32>
    %213 = arith.select %194, %211, %212 : vector<1x4xi1>, vector<1x4xf32>
    %cst_35 = arith.constant 0.000000e+00 : f32
    %214 = vector.broadcast %cst_35 : f32 to vector<1x4xf32>
    %215 = arith.subf %214, %213 : vector<1x4xf32>
    %216 = vector.broadcast %198 : vector<1x4xf32> to vector<8x4xf32>
    %217 = arith.mulf %216, %191 : vector<8x4xf32>
    %218 = arith.mulf %217, %203 : vector<8x4xf32>
    %cst_36 = arith.constant 1.000000e+00 : f32
    %219 = vector.broadcast %cst_36 : f32 to vector<8x4xf32>
    %220 = arith.subf %219, %191 : vector<8x4xf32>
    %221 = arith.mulf %220, %208 : vector<8x4xf32>
    %222 = arith.addf %218, %221 : vector<8x4xf32>
    %223 = vector.broadcast %215 : vector<1x4xf32> to vector<8x4xf32>
    %224 = arith.mulf %223, %222 : vector<8x4xf32>
    %225 = vector.shape_cast %224 : vector<8x4xf32> to vector<1x8x4xf32>
    %cst_37 = arith.constant dense<0.000000e+00> : vector<1xf32>
    %226 = vector.multi_reduction <add>, %225, %cst_37 [1, 2] : vector<1x8x4xf32> to vector<1xf32>
    %227 = vector.shape_cast %226 : vector<1xf32> to vector<1x1x1xf32>
    %228 = vector.extract %227[0, 0, 0] : f32 from vector<1x1x1xf32>
    %cst_38 = arith.constant 1.000000e+00 : f32
    %229 = vector.broadcast %cst_38 : f32 to vector<8x32xf32>
    %230 = arith.addf %229, %109 : vector<8x32xf32>
    %231 = arith.subf %230, %110 : vector<8x32xf32>
    %232 = arith.mulf %108, %108 : vector<8x32xf32>
    %233 = arith.subf %231, %232 : vector<8x32xf32>
    %234 = vector.shape_cast %233 : vector<8x32xf32> to vector<1x8x32xf32>
    %cst_39 = arith.constant dense<0.000000e+00> : vector<1xf32>
    %235 = vector.multi_reduction <add>, %234, %cst_39 [1, 2] : vector<1x8x32xf32> to vector<1xf32>
    %236 = vector.shape_cast %235 : vector<1xf32> to vector<1x1x1xf32>
    %237 = vector.extract %236[0, 0, 0] : f32 from vector<1x1x1xf32>
    %cst_40 = arith.constant -8.43062878E-7 : f32
    %238 = arith.mulf %cst_40, %237 : f32
    %cst_41 = arith.constant dense<0xFF800000> : vector<8xf32>
    %239 = vector.multi_reduction <maximumf>, %122, %cst_41 [1] : vector<8x32xf32> to vector<8xf32>
    %240 = vector.shape_cast %239 : vector<8xf32> to vector<8x1xf32>
    %241 = vector.broadcast %240 : vector<8x1xf32> to vector<8x32xf32>
    %242 = arith.subf %122, %241 : vector<8x32xf32>
    %243 = math.exp %242 : vector<8x32xf32>
    %cst_42 = arith.constant dense<0.000000e+00> : vector<8xf32>
    %244 = vector.multi_reduction <add>, %243, %cst_42 [1] : vector<8x32xf32> to vector<8xf32>
    %245 = vector.shape_cast %244 : vector<8xf32> to vector<8x1xf32>
    %246 = math.log %245 : vector<8x1xf32>
    %247 = vector.broadcast %246 : vector<8x1xf32> to vector<8x32xf32>
    %248 = arith.subf %242, %247 : vector<8x32xf32>
    %249 = vector.broadcast %245 : vector<8x1xf32> to vector<8x32xf32>
    %250 = arith.subf %249, %243 : vector<8x32xf32>
    %cst_43 = arith.constant 1.000000e-30 : f32
    %251 = vector.broadcast %cst_43 : f32 to vector<8x32xf32>
    %252 = arith.maximumf %250, %251 : vector<8x32xf32>
    %253 = math.log %252 : vector<8x32xf32>
    %254 = vector.broadcast %246 : vector<8x1xf32> to vector<8x32xf32>
    %255 = arith.subf %253, %254 : vector<8x32xf32>
    %cst_44 = arith.constant 0.899999976 : f32
    %256 = vector.broadcast %cst_44 : f32 to vector<8x32xf32>
    %257 = arith.mulf %125, %256 : vector<8x32xf32>
    %cst_45 = arith.constant 3.125000e-03 : f32
    %258 = vector.broadcast %cst_45 : f32 to vector<8x32xf32>
    %259 = arith.addf %257, %258 : vector<8x32xf32>
    %cst_46 = arith.constant -1.000000e+02 : f32
    %260 = vector.broadcast %cst_46 : f32 to vector<8x32xf32>
    %261 = arith.maximumf %248, %260 : vector<8x32xf32>
    %262 = arith.mulf %259, %261 : vector<8x32xf32>
    %cst_47 = arith.constant 1.000000e+00 : f32
    %263 = vector.broadcast %cst_47 : f32 to vector<8x32xf32>
    %264 = arith.subf %263, %259 : vector<8x32xf32>
    %cst_48 = arith.constant -1.000000e+02 : f32
    %265 = vector.broadcast %cst_48 : f32 to vector<8x32xf32>
    %266 = arith.maximumf %255, %265 : vector<8x32xf32>
    %267 = arith.mulf %264, %266 : vector<8x32xf32>
    %268 = arith.addf %262, %267 : vector<8x32xf32>
    %cst_49 = arith.constant 0.000000e+00 : f32
    %269 = vector.broadcast %cst_49 : f32 to vector<8x32xf32>
    %270 = arith.subf %269, %268 : vector<8x32xf32>
    %271 = vector.shape_cast %270 : vector<8x32xf32> to vector<1x8x32xf32>
    %cst_50 = arith.constant dense<0.000000e+00> : vector<1xf32>
    %272 = vector.multi_reduction <add>, %271, %cst_50 [1, 2] : vector<1x8x32xf32> to vector<1xf32>
    %273 = vector.shape_cast %272 : vector<1xf32> to vector<1x1x1xf32>
    %274 = vector.extract %273[0, 0, 0] : f32 from vector<1x1x1xf32>
    %cst_51 = arith.constant 3.906250e-03 : f32
    %275 = arith.mulf %274, %cst_51 : f32
    %276 = vector.extract_strided_slice %113 {offsets = [0, 0], sizes = [8, 16], strides = [1, 1]} : vector<8x32xf32> to vector<8x16xf32>
    %277 = vector.extract_strided_slice %113 {offsets = [0, 16], sizes = [8, 16], strides = [1, 1]} : vector<8x32xf32> to vector<8x16xf32>
    %278 = tpu.concatenate %276, %277 in 0 : vector<8x16xf32>, vector<8x16xf32> -> vector<16x16xf32>
    %cst_52 = arith.constant dense<0.000000e+00> : vector<16x16xf32>
    %279 = tpu.matmul %278, %278, %cst_52 {dimension_numbers = #tpu.dot_dimension_numbers<[1], [1], [0], [0], [0, 0, 1, 0], [], []>} : vector<16x16xf32>, vector<16x16xf32>, vector<16x16xf32> -> vector<16x16xf32>
    %280 = arith.mulf %278, %278 : vector<16x16xf32>
    %cst_53 = arith.constant dense<0.000000e+00> : vector<16xf32>
    %281 = vector.multi_reduction <add>, %280, %cst_53 [1] : vector<16x16xf32> to vector<16xf32>
    %282 = vector.shape_cast %281 : vector<16xf32> to vector<16x1xf32>
    %cst_54 = arith.constant dense<0.000000e+00> : vector<16xf32>
    %283 = vector.multi_reduction <add>, %280, %cst_54 [1] : vector<16x16xf32> to vector<16xf32>
    %284 = vector.shape_cast %283 : vector<16xf32> to vector<1x16xf32>
    %285 = vector.broadcast %282 : vector<16x1xf32> to vector<16x16xf32>
    %286 = vector.broadcast %284 : vector<1x16xf32> to vector<16x16xf32>
    %287 = arith.addf %285, %286 : vector<16x16xf32>
    %cst_55 = arith.constant 2.000000e+00 : f32
    %288 = vector.broadcast %cst_55 : f32 to vector<16x16xf32>
    %289 = arith.mulf %288, %279 : vector<16x16xf32>
    %290 = arith.subf %287, %289 : vector<16x16xf32>
    %291 = math.absf %290 : vector<16x16xf32>
    %cst_56 = arith.constant 9.99999974E-6 : f32
    %292 = vector.broadcast %cst_56 : f32 to vector<16x16xf32>
    %293 = arith.addf %292, %291 : vector<16x16xf32>
    %cst_57 = arith.constant -1.000000e-01 : f32
    %294 = vector.broadcast %cst_57 : f32 to vector<16x16xf32>
    %295 = arith.mulf %294, %293 : vector<16x16xf32>
    %296 = math.exp %295 : vector<16x16xf32>
    %297 = vector.shape_cast %296 : vector<16x16xf32> to vector<1x16x16xf32>
    %cst_58 = arith.constant dense<0.000000e+00> : vector<1xf32>
    %298 = vector.multi_reduction <add>, %297, %cst_58 [1, 2] : vector<1x16x16xf32> to vector<1xf32>
    %299 = vector.shape_cast %298 : vector<1xf32> to vector<1x1x1xf32>
    %300 = vector.extract %299[0, 0, 0] : f32 from vector<1x1x1xf32>
    %301 = vector.extract_strided_slice %296 {offsets = [0, 0], sizes = [8, 8], strides = [1, 1]} : vector<16x16xf32> to vector<8x8xf32>
    %302 = vector.shape_cast %301 : vector<8x8xf32> to vector<1x8x8xf32>
    %cst_59 = arith.constant dense<0.000000e+00> : vector<1xf32>
    %303 = vector.multi_reduction <add>, %302, %cst_59 [1, 2] : vector<1x8x8xf32> to vector<1xf32>
    %304 = vector.shape_cast %303 : vector<1xf32> to vector<1x1x1xf32>
    %305 = vector.extract %304[0, 0, 0] : f32 from vector<1x1x1xf32>
    %306 = vector.extract_strided_slice %296 {offsets = [8, 8], sizes = [8, 8], strides = [1, 1]} : vector<16x16xf32> to vector<8x8xf32>
    %307 = vector.shape_cast %306 : vector<8x8xf32> to vector<1x8x8xf32>
    %cst_60 = arith.constant dense<0.000000e+00> : vector<1xf32>
    %308 = vector.multi_reduction <add>, %307, %cst_60 [1, 2] : vector<1x8x8xf32> to vector<1xf32>
    %309 = vector.shape_cast %308 : vector<1xf32> to vector<1x1x1xf32>
    %310 = vector.extract %309[0, 0, 0] : f32 from vector<1x1x1xf32>
    %311 = arith.subf %300, %305 : f32
    %312 = arith.subf %311, %310 : f32
    %cst_61 = arith.constant 5.000000e-01 : f32
    %313 = arith.mulf %cst_61, %312 : f32
    %cst_62 = arith.constant -3.125000e-02 : f32
    %314 = arith.mulf %cst_62, %313 : f32
    %cst_63 = arith.constant 7.99999189 : f32
    %315 = arith.subf %305, %cst_63 : f32
    %cst_64 = arith.constant 0.0178571437 : f32
    %316 = arith.mulf %cst_64, %315 : f32
    %317 = arith.addf %314, %316 : f32
    %cst_65 = arith.constant 7.99999189 : f32
    %318 = arith.subf %310, %cst_65 : f32
    %cst_66 = arith.constant 0.0178571437 : f32
    %319 = arith.mulf %cst_66, %318 : f32
    %320 = arith.addf %317, %319 : f32
    %cst_67 = arith.constant 0.000000e+00 : f32
    %321 = arith.subf %cst_67, %320 : f32
    %cst_68 = arith.constant 1.000000e+00 : f32
    %322 = arith.mulf %cst_68, %321 : f32
    %cst_69 = arith.constant 1.000000e+00 : f32
    %323 = arith.mulf %cst_69, %143 : f32
    %324 = arith.addf %322, %323 : f32
    %325 = arith.addf %324, %228 : f32
    %326 = arith.addf %325, %238 : f32
    %327 = arith.addf %326, %275 : f32
    %c0_70 = arith.constant 0 : index
    %c0_71 = arith.constant 0 : index
    %328 = memref.load %arg2[%c0_70, %c0_71] : memref<1x1xf32, #tpu.memory_space<smem>>
    memref.store %327, %arg2[%c0_70, %c0_71] : memref<1x1xf32, #tpu.memory_space<smem>>
    return
  }
}

</mosaic_0001>

<llo_original>
// kernel: drl_classifier_forward.1
$region0: #{drl_classifier_forward.1}
  #allocation0 [shape = 'u32[]', space=smem, size = 0x4, offset = 0x4, fixed_abs, tag = 'smem constant byte address 0x4 - core index']
  #allocation1 [shape = 'u32[72,128]{1,0:T(1,128)}', space=vmem, size = 0x9000, scoped, tag = 'internal scratch']
  %s0 = inlined_call_operand.vmem [shape: bf16[64,171], index: 0, kind: input, shape index: {}]
  %s1 = inlined_call_operand.vmem [shape: f32[8,299], index: 1, kind: input, shape index: {}]
  %s2 = inlined_call_operand.hbm [shape: f32[1,1], index: 2, kind: output, shape index: {}]
  %s3 = sld [smem:[#allocation0]]
  $region18: #{drl_classifier_forward.1} parent=0
    _
  %s5 = ssub.s32 1, %s3
  %s6 = scalar_select 0, %s5, %s3
  $region1: #{drl_classifier_forward.1} parent=0
    #allocation2 [shape = 'u8[512]{0}', space=smem, size = 0x200, scoped, tag = 'output window, operand 0, single buffered']
    #allocation3 [shape = 's32[1]{0}', space=sflag, size = 0x4, scoped, tag = 'scoped memory for drl_classifier_forward.1']
    %7 = vsyncpa [#allocation3], 0
    // Predicated region
    $region2: #{drl_classifier_forward.1} parent=1 // pred_check
      _
    $region3: #{drl_classifier_forward.1} parent=1 // pred_check_branch
      %9 = sbr.rel (0) target = $region5
    $region4: #{drl_classifier_forward.1} parent=1 // pred_region
      _
    $region5: #{drl_classifier_forward.1} parent=1 // pred_fallthru
      _
    // Predicated region
    $region6: #{drl_classifier_forward.1} parent=1 // pred_check
      _
    $region7: #{drl_classifier_forward.1} parent=1 // pred_check_branch
      %11 = sbr.rel (0) target = $region9
    $region8: #{drl_classifier_forward.1} parent=1 // pred_region
      _
    $region9: #{drl_classifier_forward.1} parent=1 // pred_fallthru
      _
    %v13 = vld [vmem:[%s0] sm:$0xff]
    %v14 = vld [vmem:[%s0 + $0x8] sm:$0xff]
    %v15 = vld [vmem:[%s0 + $0x10] sm:$0xff]
    %v16 = vld [vmem:[%s0 + $0x18] sm:$0xff]
    %v17 = vld [vmem:[%s0 + $0x20] sm:$0xff]
    %v18 = vld [vmem:[%s0 + $0x28] sm:$0xff]
    %v19 = vld [vmem:[%s0 + $0x30] sm:$0xff]
    %v20 = vld [vmem:[%s0 + $0x38] sm:$0xff]
    %v21 = vld [vmem:[%s1] sm:$0xff]
    %v22 = vld [vmem:[%s1 + $0x8] sm:$0xff]
    %v23 = vld [vmem:[%s1 + $0x10] sm:$0xff]
    %v24 = vlaneseq
    %v25 = vand.u32 %v24, 127
    %v26 = vcvt.s32.f32 %v25
    %28 = vset.pattern.permute.xlu0 48
    %29 = vperm.xlu0 %28, %v22
    %v30 = vpop.permute.xlu0 %29
    %vm32 = vcmp.eq.f32.partialorder %v30, %v26
    %v33 = vsel %vm32, 1, 0
    %v34 = vcvt.s32.f32 %v33
    %35 = vset.pattern.permute.xlu0 56
    %36 = vperm.xlu0 %35, %v22
    %v37 = vpop.permute.xlu0 %36
    %v39 = vmul.f32 %v37, %v34
    %v40 = vadd.f32 %v39, 0.0
    %41 = vset.pattern.permute.xlu0 49
    %42 = vperm.xlu0 %41, %v22
    %v43 = vpop.permute.xlu0 %42
    %vm45 = vcmp.eq.f32.partialorder %v43, %v26
    %v46 = vsel %vm45, 1, 0
    %v47 = vcvt.s32.f32 %v46
    %48 = vset.pattern.permute.xlu0 57
    %49 = vperm.xlu0 %48, %v22
    %v50 = vpop.permute.xlu0 %49
    %v52 = vmul.f32 %v50, %v47
    %v53 = vadd.f32 %v40, %v52
    %54 = vset.pattern.permute.xlu0 50
    %55 = vperm.xlu0 %54, %v22
    %v56 = vpop.permute.xlu0 %55
    %vm58 = vcmp.eq.f32.partialorder %v56, %v26
    %v59 = vsel %vm58, 1, 0
    %v60 = vcvt.s32.f32 %v59
    %61 = vset.pattern.permute.xlu0 58
    %62 = vperm.xlu0 %61, %v22
    %v63 = vpop.permute.xlu0 %62
    %v65 = vmul.f32 %v63, %v60
    %v66 = vadd.f32 %v53, %v65
    %67 = vset.pattern.permute.xlu0 51
    %68 = vperm.xlu0 %67, %v22
    %v69 = vpop.permute.xlu0 %68
    %vm71 = vcmp.eq.f32.partialorder %v69, %v26
    %v72 = vsel %vm71, 1, 0
    %v73 = vcvt.s32.f32 %v72
    %74 = vset.pattern.permute.xlu0 59
    %75 = vperm.xlu0 %74, %v22
    %v76 = vpop.permute.xlu0 %75
    %v78 = vmul.f32 %v76, %v73
    %v79 = vadd.f32 %v66, %v78
    %80 = vset.pattern.permute.xlu0 52
    %81 = vperm.xlu0 %80, %v22
    %v82 = vpop.permute.xlu0 %81
    %vm84 = vcmp.eq.f32.partialorder %v82, %v26
    %v85 = vsel %vm84, 1, 0
    %v86 = vcvt.s32.f32 %v85
    %87 = vset.pattern.permute.xlu0 60
    %88 = vperm.xlu0 %87, %v22
    %v89 = vpop.permute.xlu0 %88
    %v91 = vmul.f32 %v89, %v86
    %v92 = vadd.f32 %v79, %v91
    %93 = vset.pattern.permute.xlu0 53
    %94 = vperm.xlu0 %93, %v22
    %v95 = vpop.permute.xlu0 %94
    %vm97 = vcmp.eq.f32.partialorder %v95, %v26
    %v98 = vsel %vm97, 1, 0
    %v99 = vcvt.s32.f32 %v98
    %100 = vset.pattern.permute.xlu0 61
    %101 = vperm.xlu0 %100, %v22
    %v102 = vpop.permute.xlu0 %101
    %v104 = vmul.f32 %v102, %v99
    %v105 = vadd.f32 %v92, %v104
    %106 = vset.pattern.permute.xlu0 54
    %107 = vperm.xlu0 %106, %v22
    %v108 = vpop.permute.xlu0 %107
    %vm110 = vcmp.eq.f32.partialorder %v108, %v26
    %v111 = vsel %vm110, 1, 0
    %v112 = vcvt.s32.f32 %v111
    %113 = vset.pattern.permute.xlu0 62
    %114 = vperm.xlu0 %113, %v22
    %v115 = vpop.permute.xlu0 %114
    %v117 = vmul.f32 %v115, %v112
    %v118 = vadd.f32 %v105, %v117
    %119 = vset.pattern.permute.xlu0 55
    %120 = vperm.xlu0 %119, %v22
    %v121 = vpop.permute.xlu0 %120
    %vm123 = vcmp.eq.f32.partialorder %v121, %v26
    %v124 = vsel %vm123, 1, 0
    %v125 = vcvt.s32.f32 %v124
    %126 = vset.pattern.permute.xlu0 63
    %127 = vperm.xlu0 %126, %v22
    %v128 = vpop.permute.xlu0 %127
    %v130 = vmul.f32 %v128, %v125
    %v131 = vadd.f32 %v118, %v130
    %132 = vrot.lane.b32.xlu0 %v22, 72
    %v133 = vpop.permute.xlu0 %132
    %vm135 = vcmask 64512
    %v136 = vsel %vm135, %v133, 0.0
    %137 = vadd.xlane.f32.xlu0 %v136
    %v138 = vpop.xlane.xlu0 %137
    %v139 = vpack.c.bf16 %v131, %v131
    %v148 = vunpack.c.l.b16 %v13
    %v149 = vunpack.c.l.b16 %v14
    %v150 = vunpack.c.l.b16 %v15
    %v151 = vunpack.c.l.b16 %v16
    %v152 = vunpack.c.l.b16 %v17
    %v153 = vunpack.c.l.b16 %v18
    %v154 = vunpack.c.l.b16 %v19
    %v155 = vunpack.c.l.b16 %v20
    %v156 = vpack.c.b16 %v149, %v148
    %v157 = vpack.c.b16 %v151, %v150
    %v158 = vpack.c.b16 %v153, %v152
    %v159 = vpack.c.b16 %v155, %v154
    %vm164 = vcmask 523264
    %v166 = vsel %vm164, %v139, 0
    %168 = vmatpush.bf16.msra.mxu0 0
    %169 = vmatpush.bf16.msra.mxu0 0
    %170 = vmatpush.bf16.msra.mxu0 0
    %171 = vmatpush.bf16.msra.mxu0 0
    %172 = vmatpush.bf16.msra.mxu0 %v159
    %173 = vmatpush.bf16.msra.mxu0 %v158
    %174 = vmatpush.bf16.msra.mxu0 %v157
    %175 = vmatpush.bf16.msra.mxu0 %v156
    %176 = vmatmul.bf16.gmra.mxu0 %v166
    %v177 = vpop.f32.mrf.mxu0
    %v178 = vadd.f32 0.0, %v177
    %v179 = vpop.f32.mrf.mxu0
    %180 = vdwg.mxu0
    %v181 = vmax.f32 %v138, 1.0
    %v182 = vrcp.pop %v181
    %v183 = vmul.f32 %v181, %v182
    %v184 = vsub.f32 1.0, %v183
    %v185 = vmul.f32 %v182, %v184
    %v186 = vadd.f32 %v182, %v185
    %vm187 = vweird.f32 %v181
    %vm188 = vweird.f32 %v182
    %vm189 = vmor %vm187, %vm188
    %v190 = vsel %vm189, %v182, %v186
    %v191 = vand.u32 2147483647, %v181
    %vm192 = vcmp.eq.f32.partialorder %v191, 8.507059e+37
    %v193 = vand.u32 %v181, 2147483648
    %v194 = vor.u32 1.1754944e-38, %v193
    %v195 = vsel %vm192, %v194, %v190
    %v196 = vmul.f32 %v178, %v195
    %v197 = vpack.c.bf16 %v196, %v196
    %198 = vrot.lane.b32.xlu0 %v156, 96
    %v199 = vpop.permute.xlu0 %198
    %200 = vrot.lane.b32.xlu0 %v157, 96
    %v201 = vpop.permute.xlu0 %200
    %205 = vrot.lane.b32.xlu0 %v21, 96
    %v206 = vpop.permute.xlu0 %205
    %vm208 = vcmask 261120
    %v210 = vsel %vm208, %v197, 0
    %212 = vmatpush.bf16.msra.mxu0 0
    %213 = vmatpush.bf16.msra.mxu0 0
    %214 = vmatpush.bf16.msra.mxu0 0
    %215 = vmatpush.bf16.msra.mxu0 0
    %216 = vmatpush.bf16.msra.mxu0 0
    %217 = vmatpush.bf16.msra.mxu0 0
    %218 = vmatpush.bf16.msra.mxu0 %v201
    %219 = vmatpush.bf16.msra.mxu0 %v199
    %220 = vmatmul.bf16.gmra.mxu0 %v210
    %v221 = vpop.f32.mrf.mxu0
    %v222 = vadd.f32 %v206, %v221
    %v223 = vpop.f32.mrf.mxu0
    %224 = vdwg.mxu0
    %v225 = vtanh.pop %v222
    %v226 = vpack.c.bf16 %v225, %v225
    %227 = vrot.lane.b32.xlu0 %v156, 64
    %v228 = vpop.permute.xlu0 %227
    %229 = vrot.lane.b32.xlu0 %v157, 64
    %v230 = vpop.permute.xlu0 %229
    %233 = vrot.lane.b32.xlu0 %v21, 64
    %v234 = vpop.permute.xlu0 %233
    %v237 = vsel %vm208, %v226, 0
    %239 = vmatpush.bf16.msra.mxu0 0
    %240 = vmatpush.bf16.msra.mxu0 0
    %241 = vmatpush.bf16.msra.mxu0 0
    %242 = vmatpush.bf16.msra.mxu0 0
    %243 = vmatpush.bf16.msra.mxu0 0
    %244 = vmatpush.bf16.msra.mxu0 0
    %245 = vmatpush.bf16.msra.mxu0 %v230
    %246 = vmatpush.bf16.msra.mxu0 %v228
    %247 = vmatmul.bf16.gmra.mxu0 %v237
    %v248 = vpop.f32.mrf.mxu0
    %v249 = vadd.f32 %v234, %v248
    %v250 = vpop.f32.mrf.mxu0
    %251 = vdwg.mxu0
    %v252 = vmul.f32 %v249, 1.442695
    %v253 = vpow.pop %v252
    %255 = vrot.lane.b32.xlu0 %v253, 32
    %v256 = vpop.permute.xlu0 %255
    %v258 = vmul.f32 %v22, %v256
    %260 = vrot.lane.b32.xlu0 %v258, 64
    %v261 = vpop.permute.xlu0 %260
    %v263 = vadd.f32 %v249, %v261
    %v264 = vpack.c.bf16 %v263, %v263
    %v265 = vunpack.c.h.b16 %v13
    %v266 = vunpack.c.h.b16 %v14
    %v267 = vunpack.c.h.b16 %v15
    %v268 = vunpack.c.h.b16 %v16
    %v269 = vpack.c.b16 %v266, %v265
    %v270 = vpack.c.b16 %v268, %v267
    %v274 = vsel %vm208, %v264, 0
    %276 = vmatpush.bf16.msra.mxu0 0
    %277 = vmatpush.bf16.msra.mxu0 0
    %278 = vmatpush.bf16.msra.mxu0 0
    %279 = vmatpush.bf16.msra.mxu0 0
    %280 = vmatpush.bf16.msra.mxu0 0
    %281 = vmatpush.bf16.msra.mxu0 0
    %282 = vmatpush.bf16.msra.mxu0 %v270
    %283 = vmatpush.bf16.msra.mxu0 %v269
    %284 = vmatmul.bf16.gmra.mxu0 %v274
    %v285 = vpop.f32.mrf.mxu0
    %v286 = vadd.f32 %v22, %v285
    %v287 = vpop.f32.mrf.mxu0
    %288 = vdwg.mxu0
    %vm289 = vcmask 56320
    %v290 = vsel %vm289, %v286, -inf
    %291 = vmax.xlane.f32.xlu0 %v290
    %v292 = vpop.xlane.xlu0 %291
    %v293 = vsub.f32 %v286, %v292
    %v294 = vmul.f32 %v293, 1.442695
    %v295 = vpow.pop %v294
    %v296 = vsel %vm289, %v295, 0.0
    %297 = vadd.xlane.f32.xlu0 %v296
    %v298 = vpop.xlane.xlu0 %297
    %v299 = vlog2.pop %v298
    %v300 = vmul.f32 %v299, 0.6931472
    %v301 = vadd.f32 %v292, %v300
    %v302 = vmul.f32 %v23, %v286
    %v303 = vsel %vm289, %v302, 0.0
    %304 = vadd.xlane.f32.xlu0 %v303
    %v305 = vpop.xlane.xlu0 %304
    %v306 = vsub.f32 %v301, %v305
    %vm307 = vcmask 7168
    %v308 = vsel %vm307, %v306, 0.0
    %309 = vadd.xlane.f32.xlu0 %v308
    %v310 = vpop.xlane.xlu0 %309
    %v311 = vrot.slane %v310, 4
    %v312 = vadd.f32 %v310, %v311
    %v313 = vrot.slane %v312, 2
    %v314 = vadd.f32 %v312, %v313
    %v315 = vrot.slane %v314, 1
    %v316 = vadd.f32 %v314, %v315
    %s317 = vtos %v316
    %s318 = smul.f32 %s317, 0.125
    %320 = vrot.lane.b32.xlu0 %v23, 119
    %v321 = vpop.permute.xlu0 %320
    %vm323 = vcmask 15360
    %v324 = vsel %vm323, %v321, 0.0
    %325 = vadd.xlane.f32.xlu0 %v324
    %v326 = vpop.xlane.xlu0 %325
    %v327 = vrot.slane %v326, 4
    %v328 = vadd.f32 %v326, %v327
    %v329 = vrot.slane %v328, 2
    %v330 = vadd.f32 %v328, %v329
    %v331 = vrot.slane %v330, 1
    %v332 = vadd.f32 %v330, %v331
    %s333 = vtos %v332
    %s334 = ssub.f32 8.0, %s333
    %s335 = smax.f32 %s333, 1.0
    %v336 = vstv %s335
    %v337 = vrcp.pop %v336
    %v338 = vmul.f32 %v336, %v337
    %v339 = vsub.f32 1.0, %v338
    %v340 = vmul.f32 %v337, %v339
    %v341 = vadd.f32 %v337, %v340
    %vm342 = vweird.f32 %v336
    %vm343 = vweird.f32 %v337
    %vm344 = vmor %vm342, %vm343
    %v345 = vsel %vm344, %v337, %v341
    %v346 = vand.u32 2147483647, %v336
    %vm347 = vcmp.eq.f32.partialorder %v346, 8.507059e+37
    %v348 = vand.u32 %v336, 2147483648
    %v349 = vor.u32 1.1754944e-38, %v348
    %v350 = vsel %vm347, %v349, %v345
    %s351 = vtos %v350
    %s352 = smul.f32 %s334, %s351
    %p353 = scmp.gt.f32.partialorder %s333, 0.0
    %s354 = scalar_select %p353, 1.0, 0.0
    %v355 = vsub.f32 0.0, %v286
    %v356 = vmax.f32 %v355, 0.0
    %vm357 = vcmp.ne.f32.partialorder %v355, %v355
    %v358 = vadd.f32 %v355, 0.0
    %v359 = vand.u32 2147483647, %v355
    %v360 = vsub.f32 0.0, %v359
    %v361 = vmul.f32 %v360, 1.442695
    %v362 = vpow.pop %v361
    %v363 = vadd.f32 %v362, 1.0
    %v364 = vlog2.pop %v363
    %v365 = vmul.f32 %v364, 0.6931472
    %v366 = vmul.f32 -0.5, %v362
    %v367 = vadd.f32 %v366, 1.0
    %v368 = vmul.f32 %v367, %v362
    %v369 = vand.u32 2147483647, %v362
    %vm370 = vcmp.lt.f32.partialorder %v369, 0.0004427343
    %v371 = vsel %vm370, %v368, %v365
    %v372 = vadd.f32 %v356, %v371
    %v373 = vsel %vm357, %v358, %v372
    %v374 = vsub.f32 0.0, %v373
    %v375 = vmax.f32 %v286, 0.0
    %vm376 = vcmp.ne.f32.partialorder %v286, %v286
    %v377 = vadd.f32 %v286, 0.0
    %v378 = vand.u32 2147483647, %v286
    %v379 = vsub.f32 0.0, %v378
    %v380 = vmul.f32 %v379, 1.442695
    %v381 = vpow.pop %v380
    %v382 = vadd.f32 %v381, 1.0
    %v383 = vlog2.pop %v382
    %v384 = vmul.f32 %v383, 0.6931472
    %v385 = vmul.f32 -0.5, %v381
    %v386 = vadd.f32 %v385, 1.0
    %v387 = vmul.f32 %v386, %v381
    %v388 = vand.u32 2147483647, %v381
    %vm389 = vcmp.lt.f32.partialorder %v388, 0.0004427343
    %v390 = vsel %vm389, %v387, %v384
    %v391 = vadd.f32 %v375, %v390
    %v392 = vsel %vm376, %v377, %v391
    %v393 = vsub.f32 0.0, %v392
    %v394 = vmul.f32 %v23, 0.9
    %v395 = vadd.f32 %v394, 0.05
    %vm396 = vcmp.ge.s32.totalorder %v25, 2
    %s397 = smul.f32 %s354, %s352
    %v398 = vstv %s397
    %v399 = vsel %vm396, %v398, 1.0
    %v400 = vmax.f32 %v374, -100.0
    %v401 = vsel %vm396, 1, 0
    %vm402 = vcmp.eq.s32.totalorder %v401, 1
    %404 = vrot.lane.b32.xlu0 %v374, 121
    %v405 = vpop.permute.xlu0 %404
    %408 = vrot.lane.b32.xlu0 %v400, 121
    %v409 = vpop.permute.xlu0 %408
    %v411 = vsel %vm402, %v405, %v409
    %v412 = vmax.f32 %v393, -100.0
    %414 = vrot.lane.b32.xlu0 %v393, 121
    %v415 = vpop.permute.xlu0 %414
    %418 = vrot.lane.b32.xlu0 %v412, 121
    %v419 = vpop.permute.xlu0 %418
    %v421 = vsel %vm402, %v415, %v419
    %v422 = vrcp.pop 16.0
    %v423 = vmul.f32 16.0, %v422
    %v424 = vsub.f32 1.0, %v423
    %v425 = vmul.f32 %v422, %v424
    %v426 = vadd.f32 %v422, %v425
    %vm427 = vweird.f32 %v422
    %v428 = vsel %vm427, %v422, %v426
    %s429 = vtos %v428
    %s430 = smul.f32 %s354, %s429
    %v431 = vstv %s430
    %v432 = vsel %vm396, %v431, 0.0625
    %v433 = vsub.f32 0.0, %v432
    %435 = vrot.lane.b32.xlu0 %v395, 121
    %v436 = vpop.permute.xlu0 %435
    %v438 = vmul.f32 %v399, %v436
    %v439 = vmul.f32 %v438, %v411
    %v440 = vsub.f32 1.0, %v395
    %442 = vrot.lane.b32.xlu0 %v421, 7
    %v443 = vpop.permute.xlu0 %442
    %v445 = vmul.f32 %v440, %v443
    %447 = vrot.lane.b32.xlu0 %v445, 121
    %v448 = vpop.permute.xlu0 %447
    %v450 = vadd.f32 %v439, %v448
    %v451 = vmul.f32 %v433, %v450
    %vm452 = vcmask 31744
    %v453 = vsel %vm452, %v451, 0.0
    %454 = vadd.xlane.f32.xlu0 %v453
    %v455 = vpop.xlane.xlu0 %454
    %v456 = vrot.slane %v455, 4
    %v457 = vadd.f32 %v455, %v456
    %v458 = vrot.slane %v457, 2
    %v459 = vadd.f32 %v457, %v458
    %v460 = vrot.slane %v459, 1
    %v461 = vadd.f32 %v459, %v460
    %s462 = vtos %v461
    %v463 = vadd.f32 %v249, 1.0
    %v464 = vsub.f32 %v463, %v253
    %v465 = vmul.f32 %v249, %v249
    %467 = vrot.lane.b32.xlu0 %v465, 32
    %v468 = vpop.permute.xlu0 %467
    %v470 = vsub.f32 %v464, %v468
    %472 = vrot.lane.b32.xlu0 %v470, 96
    %v473 = vpop.permute.xlu0 %472
    %v475 = vsel %vm208, %v473, 0.0
    %476 = vadd.xlane.f32.xlu0 %v475
    %v477 = vpop.xlane.xlu0 %476
    %v478 = vrot.slane %v477, 4
    %v479 = vadd.f32 %v477, %v478
    %v480 = vrot.slane %v479, 2
    %v481 = vadd.f32 %v479, %v480
    %v482 = vrot.slane %v481, 1
    %v483 = vadd.f32 %v481, %v482
    %s484 = vtos %v483
    %s485 = smul.f32 %s484, -8.430629e-07
    %vm486 = vcmask 351320
    %v487 = vsel %vm486, %v286, -inf
    %488 = vmax.xlane.f32.xlu0 %v487
    %v489 = vpop.xlane.xlu0 %488
    %v490 = vsub.f32 %v286, %v489
    %v491 = vmul.f32 %v490, 1.442695
    %v492 = vpow.pop %v491
    %494 = vrot.lane.b32.xlu0 %v492, 117
    %v495 = vpop.permute.xlu0 %494
    %v497 = vsel %vm208, %v495, 0.0
    %498 = vadd.xlane.f32.xlu0 %v497
    %v499 = vpop.xlane.xlu0 %498
    %v500 = vlog2.pop %v499
    %v501 = vmul.f32 %v500, 0.6931472
    %v502 = vsub.f32 %v490, %v501
    %v503 = vsub.f32 %v499, %v492
    %v504 = vmax.f32 %v503, 1e-30
    %v505 = vlog2.pop %v504
    %v506 = vmul.f32 %v505, 0.6931472
    %v507 = vsub.f32 %v506, %v501
    %v508 = vadd.f32 %v394, 0.003125
    %v509 = vmax.f32 %v502, -100.0
    %v510 = vmul.f32 %v508, %v509
    %v511 = vsub.f32 1.0, %v508
    %v512 = vmax.f32 %v507, -100.0
    %v513 = vmul.f32 %v511, %v512
    %v514 = vadd.f32 %v510, %v513
    %v515 = vsub.f32 0.0, %v514
    %517 = vrot.lane.b32.xlu0 %v515, 117
    %v518 = vpop.permute.xlu0 %517
    %v520 = vsel %vm208, %v518, 0.0
    %521 = vadd.xlane.f32.xlu0 %v520
    %v522 = vpop.xlane.xlu0 %521
    %v523 = vrot.slane %v522, 4
    %v524 = vadd.f32 %v522, %v523
    %v525 = vrot.slane %v524, 2
    %v526 = vadd.f32 %v524, %v525
    %v527 = vrot.slane %v526, 1
    %v528 = vadd.f32 %v526, %v527
    %s529 = vtos %v528
    %s530 = smul.f32 %s529, 0.00390625
    %532 = vrot.lane.b32.xlu0 %v263, 112
    %v533 = vpop.permute.xlu0 %532
    %vm535 = vcmask 130048
    %v536 = vsel %vm535, %v263, 0
    %v538 = vsel %vm535, %v533, 0
    %540 = vmatpush.xpose.msra.mxu0 0.0
    %541 = vmatpush.xpose.msra.mxu0 0.0
    %542 = vmatpush.xpose.msra.mxu0 0.0
    %543 = vmatpush.xpose.msra.mxu0 0.0
    %544 = vmatpush.xpose.msra.mxu0 0.0
    %545 = vmatpush.xpose.msra.mxu0 0.0
    %546 = vmatpush.xpose.msra.mxu0 0.0
    %547 = vmatpush.xpose.msra.mxu0 0.0
    %548 = vmatpush.xpose.msra.mxu0 0.0
    %549 = vmatpush.xpose.msra.mxu0 0.0
    %550 = vmatpush.xpose.msra.mxu0 0.0
    %551 = vmatpush.xpose.msra.mxu0 0.0
    %552 = vmatpush.xpose.msra.mxu0 0.0
    %553 = vmatpush.xpose.msra.mxu0 0.0
    %554 = vmatpush.xpose.msra.mxu0 %v538
    %555 = vmatpush.xpose.msra.mxu0 %v536
    %556 = vmatmul.f32.gmra.mxu0 %v536
    %v557 = vpop.f32.mrf.mxu0
    %v558 = vadd.f32 0.0, %v557
    %559 = vmatmul.f32.gmra.mxu0 %v538
    %v560 = vpop.f32.mrf.mxu0
    %v561 = vadd.f32 0.0, %v560
    %562 = vdwg.mxu0
    %v563 = vmul.f32 %v263, %v263
    %v564 = vmul.f32 %v533, %v533
    %v565 = vsel %vm535, %v563, 0.0
    %566 = vadd.xlane.f32.xlu0 %v565
    %v567 = vpop.xlane.xlu0 %566
    %v568 = vsel %vm535, %v564, 0.0
    %569 = vadd.xlane.f32.xlu0 %v568
    %v570 = vpop.xlane.xlu0 %569
    %v573 = vperm.slane %v567, %v25
    %v574 = vadd.s32 %v25, 4294967288
    %v575 = vperm.slane %v570, %v574
    %vm576 = vcmask 130112
    %v577 = vsel %vm576, %v575, %v573
    %vm578 = vcmask 1042434
    %v579 = vsel %vm578, %v577, %v577
    %vm580 = vcmask 1043459
    %v581 = vsel %vm580, %v577, %v579
    %vm582 = vcmask 1044484
    %v583 = vsel %vm582, %v577, %v581
    %vm584 = vcmask 1045509
    %v585 = vsel %vm584, %v577, %v583
    %vm586 = vcmask 1046534
    %v587 = vsel %vm586, %v577, %v585
    %vm588 = vcmask 1047559
    %v589 = vsel %vm588, %v577, %v587
    %v591 = vadd.f32 %v567, %v589
    %v592 = vadd.f32 %v570, %v589
    %v593 = vmul.f32 %v558, 2.0
    %v594 = vmul.f32 %v561, 2.0
    %v595 = vsub.f32 %v591, %v593
    %v596 = vsub.f32 %v592, %v594
    %v597 = vand.u32 2147483647, %v595
    %v598 = vand.u32 2147483647, %v596
    %v599 = vadd.f32 %v597, 1e-05
    %v600 = vadd.f32 %v598, 1e-05
    %v601 = vmul.f32 %v599, -0.1
    %v602 = vmul.f32 %v600, -0.1
    %v603 = vmul.f32 %v601, 1.442695
    %v604 = vpow.pop %v603
    %v605 = vmul.f32 %v602, 1.442695
    %v606 = vpow.pop %v605
    %v607 = vsel %vm535, %v604, 0.0
    %v608 = vsel %vm535, %v606, 0.0
    %v609 = vadd.f32 %v607, %v608
    %610 = vadd.xlane.f32.xlu0 %v609
    %v611 = vpop.xlane.xlu0 %610
    %v612 = vrot.slane %v611, 4
    %v613 = vadd.f32 %v611, %v612
    %v614 = vrot.slane %v613, 2
    %v615 = vadd.f32 %v613, %v614
    %v616 = vrot.slane %v615, 1
    %v617 = vadd.f32 %v615, %v616
    %s618 = vtos %v617
    %v619 = vsel %vm135, %v604, 0.0
    %620 = vadd.xlane.f32.xlu0 %v619
    %v621 = vpop.xlane.xlu0 %620
    %v622 = vrot.slane %v621, 4
    %v623 = vadd.f32 %v621, %v622
    %v624 = vrot.slane %v623, 2
    %v625 = vadd.f32 %v623, %v624
    %v626 = vrot.slane %v625, 1
    %v627 = vadd.f32 %v625, %v626
    %s628 = vtos %v627
    %630 = vrot.lane.b32.xlu0 %v606, 120
    %v631 = vpop.permute.xlu0 %630
    %v633 = vsel %vm135, %v631, 0.0
    %634 = vadd.xlane.f32.xlu0 %v633
    %v635 = vpop.xlane.xlu0 %634
    %v636 = vrot.slane %v635, 4
    %v637 = vadd.f32 %v635, %v636
    %v638 = vrot.slane %v637, 2
    %v639 = vadd.f32 %v637, %v638
    %v640 = vrot.slane %v639, 1
    %v641 = vadd.f32 %v639, %v640
    %s642 = vtos %v641
    %s643 = ssub.f32 %s618, %s628
    %s644 = ssub.f32 %s643, %s642
    %s645 = smul.f32 %s644, 0.5
    %s646 = smul.f32 %s645, -0.03125
    %s647 = ssub.f32 %s628, 7.999992
    %s648 = smul.f32 %s647, 0.017857144
    %s649 = sadd.f32 %s646, %s648
    %s650 = ssub.f32 %s642, 7.999992
    %s651 = smul.f32 %s650, 0.017857144
    %s652 = sadd.f32 %s649, %s651
    %s653 = ssub.f32 0.0, %s652
    %s654 = sadd.f32 %s653, %s318
    %s655 = sadd.f32 %s654, %s462
    %s656 = sadd.f32 %s655, %s485
    %s657 = sadd.f32 %s656, %s530
    %s658 = scalar_lea.smem [#allocation2], 0
    %659 = sst [smem:[%s658]] %s657
    // Predicated region
    $region10: #{drl_classifier_forward.1} parent=1 // pred_check
      _
    $region11: #{drl_classifier_forward.1} parent=1 // pred_check_branch
      %661 = sbr.rel (0) target = $region13
    $region12: #{drl_classifier_forward.1} parent=1 // pred_region
      %663 = vsyncadd [#allocation3], 0
      %s665 = sshll.u32 %s2, 4
      %s666 = int_to_ptr.hbm [resolvable:$true] %s665
      %668 = dma.smem_to_hbm [#allocation2], 16, %s666, [#allocation3]
    $region13: #{drl_classifier_forward.1} parent=1 // pred_fallthru
      _
    // Predicated region
    $region14: #{drl_classifier_forward.1} parent=1 // pred_check
      _
    $region15: #{drl_classifier_forward.1} parent=1 // pred_check_branch
      %670 = sbr.rel (0) target = $region17
    $region16: #{drl_classifier_forward.1} parent=1 // pred_region
      %672 = dma.done [#allocation3], 16
    $region17: #{drl_classifier_forward.1} parent=1 // pred_fallthru
      _
    %673 = sfence
    %674 = vsyncpa [#allocation3], 1

</llo_original>
